<compile_context>
chip_gen: v7x
topology: tpu7x:2x2x1
jax: 0.10.0
libtpu: 0.0.40
codegen_flags: <defaults>
</compile_context>

<pallas_src>
import jax
import jax.numpy as jnp
from jax.experimental import pallas as pl
from jax.experimental.pallas import tpu as pltpu

INPUT_DIM = 784
HIDDEN_DIMS = [128, 64]
OUT_DIM = 10

LANE = 128
SUBLANE = 8


def _round_up(n, m):
    return ((n + m - 1) // m) * m


def mlp_kernel(x_ref, w1_ref, b1_ref, w2_ref, b2_ref, w3_ref, b3_ref, o_ref):
    # Hidden layer 1: relu(x @ W1 + b1)   (bf16 MXU inputs, f32 accumulation)
    h = jnp.dot(x_ref[...], w1_ref[...], preferred_element_type=jnp.float32)
    h = jnp.maximum(h + b1_ref[...], 0.0).astype(jnp.bfloat16)
    # Hidden layer 2: relu(h @ W2 + b2)
    h = jnp.dot(h, w2_ref[...], preferred_element_type=jnp.float32)
    h = jnp.maximum(h + b2_ref[...], 0.0).astype(jnp.bfloat16)
    # Output layer: h @ W3 + b3 (no activation, matches PyTorch forward)
    out = jnp.dot(h, w3_ref[...], preferred_element_type=jnp.float32)
    o_ref[...] = (out + b3_ref[...]).astype(o_ref.dtype)


@jax.jit
def feedforward_nn(x, w1, b1, w2, b2, w3, b3):
    B, D = x.shape
    H1 = w1.shape[1]
    H2 = w2.shape[1]
    O = w3.shape[1]

    # Lane-pad narrow widths so every matmul output / the final store is a
    # dense multiple of 128 lanes.
    H1p = _round_up(H1, LANE)
    H2p = _round_up(H2, LANE)
    Op = _round_up(O, LANE)

    # Batch tiling: one grid step when the whole batch comfortably fits VMEM
    # (always true at this model size); otherwise 256-row tiles (multiple of
    # 128 -> full MXU row utilization on every generation).
    if B <= 512:
        Bp = _round_up(B, SUBLANE)
        tb = Bp
    else:
        tb = 256
        Bp = _round_up(B, tb)

    # bf16 activations/weights for the MXU; biases stay f32 (added to the f32
    # accumulator in the epilogue).
    xp = jnp.pad(x, ((0, Bp - B), (0, 0))).astype(jnp.bfloat16)
    w1p = jnp.pad(w1, ((0, 0), (0, H1p - H1))).astype(jnp.bfloat16)
    w2p = jnp.pad(w2, ((0, H1p - H1), (0, H2p - H2))).astype(jnp.bfloat16)
    w3p = jnp.pad(w3, ((0, H2p - H2), (0, Op - O))).astype(jnp.bfloat16)
    b1p = jnp.pad(b1, ((0, 0), (0, H1p - H1))).astype(jnp.float32)
    b2p = jnp.pad(b2, ((0, 0), (0, H2p - H2))).astype(jnp.float32)
    b3p = jnp.pad(b3, ((0, 0), (0, Op - O))).astype(jnp.float32)

    grid = (Bp // tb,)

    def x_map(i):
        return (i, 0)

    def resident(i):
        return (0, 0)

    out = pl.pallas_call(
        mlp_kernel,
        out_shape=jax.ShapeDtypeStruct((Bp, Op), jnp.float32),
        grid_spec=pl.GridSpec(
            grid=grid,
            in_specs=[
                pl.BlockSpec((tb, D), x_map),        # x batch tile
                pl.BlockSpec((D, H1p), resident),    # W1 (resident in VMEM)
                pl.BlockSpec((1, H1p), resident),    # b1
                pl.BlockSpec((H1p, H2p), resident),  # W2
                pl.BlockSpec((1, H2p), resident),    # b2
                pl.BlockSpec((H2p, Op), resident),   # W3
                pl.BlockSpec((1, Op), resident),     # b3
            ],
            out_specs=pl.BlockSpec((tb, Op), x_map),
        ),
        compiler_params=pltpu.CompilerParams(
            dimension_semantics=("parallel",),
        ),
    )(xp, w1p, b1p, w2p, b2p, w3p, b3p)

    # Slice away batch and lane padding (back to the true 10 logits).
    return out[:B, :O]


def init_linear_params(key, in_dim, out_dim):
    """Deterministic init mimicking torch.nn.Linear default (uniform +/- 1/sqrt(in))."""
    k_w, k_b = jax.random.split(key)
    bound = 1.0 / jnp.sqrt(jnp.float32(in_dim))
    # Stored already transposed: (in_dim, out_dim) so the kernel does x @ W.
    w = jax.random.uniform(k_w, (in_dim, out_dim), jnp.float32, -bound, bound)
    b = jax.random.uniform(k_b, (1, out_dim), jnp.float32, -bound, bound)
    return w, b


def reference_forward(x, w1, b1, w2, b2, w3, b3):
    h = jnp.maximum(x @ w1 + b1, 0.0)
    h = jnp.maximum(h @ w2 + b2, 0.0)
    return h @ w3 + b3


if __name__ == "__main__":
    key = jax.random.PRNGKey(0)
    k_x, k_l1, k_l2, k_l3 = jax.random.split(key, 4)

    batch = 32  # matches the module's default batch_size
    x = jax.random.normal(k_x, (batch, INPUT_DIM), jnp.float32)

    w1, b1 = init_linear_params(k_l1, INPUT_DIM, HIDDEN_DIMS[0])
    w2, b2 = init_linear_params(k_l2, HIDDEN_DIMS[0], HIDDEN_DIMS[1])
    w3, b3 = init_linear_params(k_l3, HIDDEN_DIMS[1], OUT_DIM)

    out = feedforward_nn(x, w1, b1, w2, b2, w3, b3)
    out = jax.block_until_ready(out)

    ref = reference_forward(x, w1, b1, w2, b2, w3, b3)
    assert out.shape == (batch, OUT_DIM)
    # bf16 matmul inputs with f32 accumulation: compare at bf16-level tolerance.
    assert jnp.allclose(out, ref, atol=5e-2, rtol=5e-2)

    print("KERNEL_OK")
</pallas_src>

<mosaic_0001>
module attributes {stable_mosaic.version = 11 : i64} {
  func.func @mlp_kernel(%arg0: i32, %arg1: memref<32x784xbf16, #tpu.memory_space<vmem>>, %arg2: memref<784x128xbf16, #tpu.memory_space<vmem>>, %arg3: memref<1x128xf32, #tpu.memory_space<vmem>>, %arg4: memref<128x128xbf16, #tpu.memory_space<vmem>>, %arg5: memref<1x128xf32, #tpu.memory_space<vmem>>, %arg6: memref<128x128xbf16, #tpu.memory_space<vmem>>, %arg7: memref<1x128xf32, #tpu.memory_space<vmem>>, %arg8: memref<32x128xf32, #tpu.memory_space<vmem>>) attributes {dimension_semantics = [#tpu.dimension_semantics<parallel>], iteration_bounds = array<i64: 1>, scalar_prefetch = 0 : i64, scratch_operands = 0 : i64, tpu.core_type = #tpu.core_type<tc>, window_params = [{transform_indices = @transform_0, window_bounds = array<i64: 32, 784>}, {pipeline_mode = #tpu.pipeline_mode<synchronous>, transform_indices = @transform_1, window_bounds = array<i64: 784, 128>}, {pipeline_mode = #tpu.pipeline_mode<synchronous>, transform_indices = @transform_2, window_bounds = array<i64: 1, 128>}, {pipeline_mode = #tpu.pipeline_mode<synchronous>, transform_indices = @transform_3, window_bounds = array<i64: 128, 128>}, {pipeline_mode = #tpu.pipeline_mode<synchronous>, transform_indices = @transform_4, window_bounds = array<i64: 1, 128>}, {pipeline_mode = #tpu.pipeline_mode<synchronous>, transform_indices = @transform_5, window_bounds = array<i64: 128, 128>}, {pipeline_mode = #tpu.pipeline_mode<synchronous>, transform_indices = @transform_6, window_bounds = array<i64: 1, 128>}, {transform_indices = @transform_7, window_bounds = array<i64: 32, 128>}]} {
    %c0 = arith.constant 0 : index
    %c0_0 = arith.constant 0 : index
    %0 = vector.load %arg1[%c0, %c0_0] : memref<32x784xbf16, #tpu.memory_space<vmem>>, vector<32x784xbf16>
    %c0_1 = arith.constant 0 : index
    %c0_2 = arith.constant 0 : index
    %1 = vector.load %arg2[%c0_1, %c0_2] : memref<784x128xbf16, #tpu.memory_space<vmem>>, vector<784x128xbf16>
    %cst = arith.constant dense<0.000000e+00> : vector<32x128xf32>
    %2 = tpu.matmul %0, %1, %cst {dimension_numbers = #tpu.dot_dimension_numbers<[1], [0], [0], [1], [0, 0, 1, 1], [], []>} : vector<32x784xbf16>, vector<784x128xbf16>, vector<32x128xf32> -> vector<32x128xf32>
    %c0_3 = arith.constant 0 : index
    %c0_4 = arith.constant 0 : index
    %3 = vector.load %arg3[%c0_3, %c0_4] : memref<1x128xf32, #tpu.memory_space<vmem>>, vector<1x128xf32>
    %4 = vector.broadcast %3 : vector<1x128xf32> to vector<32x128xf32>
    %5 = arith.addf %2, %4 : vector<32x128xf32>
    %cst_5 = arith.constant 0.000000e+00 : f32
    %6 = vector.broadcast %cst_5 : f32 to vector<32x128xf32>
    %7 = arith.maximumf %5, %6 : vector<32x128xf32>
    %8 = arith.truncf %7 : vector<32x128xf32> to vector<32x128xbf16>
    %c0_6 = arith.constant 0 : index
    %c0_7 = arith.constant 0 : index
    %9 = vector.load %arg4[%c0_6, %c0_7] : memref<128x128xbf16, #tpu.memory_space<vmem>>, vector<128x128xbf16>
    %cst_8 = arith.constant dense<0.000000e+00> : vector<32x128xf32>
    %10 = tpu.matmul %8, %9, %cst_8 {dimension_numbers = #tpu.dot_dimension_numbers<[1], [0], [0], [1], [0, 0, 1, 1], [], []>} : vector<32x128xbf16>, vector<128x128xbf16>, vector<32x128xf32> -> vector<32x128xf32>
    %c0_9 = arith.constant 0 : index
    %c0_10 = arith.constant 0 : index
    %11 = vector.load %arg5[%c0_9, %c0_10] : memref<1x128xf32, #tpu.memory_space<vmem>>, vector<1x128xf32>
    %12 = vector.broadcast %11 : vector<1x128xf32> to vector<32x128xf32>
    %13 = arith.addf %10, %12 : vector<32x128xf32>
    %cst_11 = arith.constant 0.000000e+00 : f32
    %14 = vector.broadcast %cst_11 : f32 to vector<32x128xf32>
    %15 = arith.maximumf %13, %14 : vector<32x128xf32>
    %16 = arith.truncf %15 : vector<32x128xf32> to vector<32x128xbf16>
    %c0_12 = arith.constant 0 : index
    %c0_13 = arith.constant 0 : index
    %17 = vector.load %arg6[%c0_12, %c0_13] : memref<128x128xbf16, #tpu.memory_space<vmem>>, vector<128x128xbf16>
    %cst_14 = arith.constant dense<0.000000e+00> : vector<32x128xf32>
    %18 = tpu.matmul %16, %17, %cst_14 {dimension_numbers = #tpu.dot_dimension_numbers<[1], [0], [0], [1], [0, 0, 1, 1], [], []>} : vector<32x128xbf16>, vector<128x128xbf16>, vector<32x128xf32> -> vector<32x128xf32>
    %c0_15 = arith.constant 0 : index
    %c0_16 = arith.constant 0 : index
    %19 = vector.load %arg7[%c0_15, %c0_16] : memref<1x128xf32, #tpu.memory_space<vmem>>, vector<1x128xf32>
    %20 = vector.broadcast %19 : vector<1x128xf32> to vector<32x128xf32>
    %21 = arith.addf %18, %20 : vector<32x128xf32>
    %c0_17 = arith.constant 0 : index
    %c0_18 = arith.constant 0 : index
    %22 = vector.load %arg8[%c0_17, %c0_18] : memref<32x128xf32, #tpu.memory_space<vmem>>, vector<32x128xf32>
    tpu.vector_store %arg8[%c0_17, %c0_18], %21 {strides = array<i32>} : memref<32x128xf32, #tpu.memory_space<vmem>>, vector<32x128xf32>,
    return
  }
  func.func @transform_0(%arg0: i32) -> (i32, i32) {
    %c0_i32 = arith.constant 0 : i32
    %c0_i32_0 = arith.constant 0 : i32
    return %arg0, %c0_i32 : i32, i32
  }
  func.func @transform_1(%arg0: i32) -> (i32, i32) {
    %c0_i32 = arith.constant 0 : i32
    %c0_i32_0 = arith.constant 0 : i32
    %c0_i32_1 = arith.constant 0 : i32
    return %c0_i32, %c0_i32_0 : i32, i32
  }
  func.func @transform_2(%arg0: i32) -> (i32, i32) {
    %c0_i32 = arith.constant 0 : i32
    %c0_i32_0 = arith.constant 0 : i32
    %c0_i32_1 = arith.constant 0 : i32
    return %c0_i32, %c0_i32_0 : i32, i32
  }
  func.func @transform_3(%arg0: i32) -> (i32, i32) {
    %c0_i32 = arith.constant 0 : i32
    %c0_i32_0 = arith.constant 0 : i32
    %c0_i32_1 = arith.constant 0 : i32
    return %c0_i32, %c0_i32_0 : i32, i32
  }
  func.func @transform_4(%arg0: i32) -> (i32, i32) {
    %c0_i32 = arith.constant 0 : i32
    %c0_i32_0 = arith.constant 0 : i32
    %c0_i32_1 = arith.constant 0 : i32
    return %c0_i32, %c0_i32_0 : i32, i32
  }
  func.func @transform_5(%arg0: i32) -> (i32, i32) {
    %c0_i32 = arith.constant 0 : i32
    %c0_i32_0 = arith.constant 0 : i32
    %c0_i32_1 = arith.constant 0 : i32
    return %c0_i32, %c0_i32_0 : i32, i32
  }
  func.func @transform_6(%arg0: i32) -> (i32, i32) {
    %c0_i32 = arith.constant 0 : i32
    %c0_i32_0 = arith.constant 0 : i32
    %c0_i32_1 = arith.constant 0 : i32
    return %c0_i32, %c0_i32_0 : i32, i32
  }
  func.func @transform_7(%arg0: i32) -> (i32, i32) {
    %c0_i32 = arith.constant 0 : i32
    %c0_i32_0 = arith.constant 0 : i32
    return %arg0, %c0_i32 : i32, i32
  }
}

</mosaic_0001>

<llo_original>
// kernel: feedforward_nn.1
$region0: #{feedforward_nn.1}
  #allocation0 [shape = 'u32[]', space=smem, size = 0x4, offset = 0x4, fixed_abs, tag = 'smem constant byte address 0x4 - core index']
  #allocation1 [shape = 'u32[144,128]{1,0:T(1,128)}', space=vmem, size = 0x12000, scoped, tag = 'internal scratch']
  %s0 = inlined_call_operand.vmem [shape: bf16[32,784], index: 0, kind: input, shape index: {}]
  %s1 = inlined_call_operand.vmem [shape: bf16[784,128], index: 1, kind: input, shape index: {}]
  %s2 = inlined_call_operand.vmem [shape: f32[1,128], index: 2, kind: input, shape index: {}]
  %s3 = inlined_call_operand.vmem [shape: bf16[128,128], index: 3, kind: input, shape index: {}]
  %s4 = inlined_call_operand.vmem [shape: f32[1,128], index: 4, kind: input, shape index: {}]
  %s5 = inlined_call_operand.vmem [shape: bf16[128,128], index: 5, kind: input, shape index: {}]
  %s6 = inlined_call_operand.vmem [shape: f32[1,128], index: 6, kind: input, shape index: {}]
  %s7 = inlined_call_operand.vmem [shape: f32[32,128], index: 7, kind: output, shape index: {}]
  %s8 = sld [smem:[#allocation0]]
  $region38: #{feedforward_nn.1} parent=0
    _
  %s10 = ssub.s32 1, %s8
  %s11 = scalar_select 0, %s10, %s8
  // Predicated region
  $region2: #{feedforward_nn.1} parent=0 // pred_check
    _
  $region3: #{feedforward_nn.1} parent=0 // pred_check_branch
    %13 = sbr.rel (0) target = $region5
  $region4: #{feedforward_nn.1} parent=0 // pred_region
    _
  $region5: #{feedforward_nn.1} parent=0 // pred_fallthru
    _
  // Predicated region
  $region6: #{feedforward_nn.1} parent=0 // pred_check
    _
  $region7: #{feedforward_nn.1} parent=0 // pred_check_branch
    %15 = sbr.rel (0) target = $region9
  $region8: #{feedforward_nn.1} parent=0 // pred_region
    _
  $region9: #{feedforward_nn.1} parent=0 // pred_fallthru
    _
  // Predicated region
  $region10: #{feedforward_nn.1} parent=0 // pred_check
    _
  $region11: #{feedforward_nn.1} parent=0 // pred_check_branch
    %17 = sbr.rel (0) target = $region13
  $region12: #{feedforward_nn.1} parent=0 // pred_region
    _
  $region13: #{feedforward_nn.1} parent=0 // pred_fallthru
    _
  // Predicated region
  $region14: #{feedforward_nn.1} parent=0 // pred_check
    _
  $region15: #{feedforward_nn.1} parent=0 // pred_check_branch
    %19 = sbr.rel (0) target = $region17
  $region16: #{feedforward_nn.1} parent=0 // pred_region
    _
  $region17: #{feedforward_nn.1} parent=0 // pred_fallthru
    _
  // Predicated region
  $region18: #{feedforward_nn.1} parent=0 // pred_check
    _
  $region19: #{feedforward_nn.1} parent=0 // pred_check_branch
    %21 = sbr.rel (0) target = $region21
  $region20: #{feedforward_nn.1} parent=0 // pred_region
    _
  $region21: #{feedforward_nn.1} parent=0 // pred_fallthru
    _
  // Predicated region
  $region22: #{feedforward_nn.1} parent=0 // pred_check
    _
  $region23: #{feedforward_nn.1} parent=0 // pred_check_branch
    %23 = sbr.rel (0) target = $region25
  $region24: #{feedforward_nn.1} parent=0 // pred_region
    _
  $region25: #{feedforward_nn.1} parent=0 // pred_fallthru
    _
  // Predicated region
  $region26: #{feedforward_nn.1} parent=0 // pred_check
    _
  $region27: #{feedforward_nn.1} parent=0 // pred_check_branch
    %25 = sbr.rel (0) target = $region29
  $region28: #{feedforward_nn.1} parent=0 // pred_region
    _
  $region29: #{feedforward_nn.1} parent=0 // pred_fallthru
    _
  %v27 = vld [vmem:[%s0] sm:$0xff]
  %v28 = vld [vmem:[%s0 + $0x8] sm:$0xff]
  %v29 = vld [vmem:[%s0 + $0x10] sm:$0xff]
  %v30 = vld [vmem:[%s0 + $0x18] sm:$0xf]
  %v31 = vld [vmem:[%s0 + $0x1c] sm:$0xff]
  %v32 = vld [vmem:[%s0 + $0x24] sm:$0xff]
  %v33 = vld [vmem:[%s0 + $0x2c] sm:$0xff]
  %v34 = vld [vmem:[%s0 + $0x34] sm:$0xf]
  %v35 = vld [vmem:[%s0 + $0x38] sm:$0xff]
  %v36 = vld [vmem:[%s0 + $0x40] sm:$0xff]
  %v37 = vld [vmem:[%s0 + $0x48] sm:$0xff]
  %v38 = vld [vmem:[%s0 + $0x50] sm:$0xf]
  %v39 = vld [vmem:[%s0 + $0x54] sm:$0xff]
  %v40 = vld [vmem:[%s0 + $0x5c] sm:$0xff]
  %v41 = vld [vmem:[%s0 + $0x64] sm:$0xff]
  %v42 = vld [vmem:[%s0 + $0x6c] sm:$0xf]
  %v43 = vld [vmem:[%s1] sm:$0xf]
  %v44 = vld [vmem:[%s1 + $0x4] sm:$0xf]
  %v45 = vld [vmem:[%s1 + $0x8] sm:$0xf]
  %v46 = vld [vmem:[%s1 + $0xc] sm:$0xf]
  %v47 = vld [vmem:[%s1 + $0x10] sm:$0xf]
  %v48 = vld [vmem:[%s1 + $0x14] sm:$0xf]
  %v49 = vld [vmem:[%s1 + $0x18] sm:$0xf]
  %v50 = vld [vmem:[%s1 + $0x1c] sm:$0xf]
  %v51 = vld [vmem:[%s1 + $0x20] sm:$0xf]
  %v52 = vld [vmem:[%s1 + $0x24] sm:$0xf]
  %v53 = vld [vmem:[%s1 + $0x28] sm:$0xf]
  %v54 = vld [vmem:[%s1 + $0x2c] sm:$0xf]
  %v55 = vld [vmem:[%s1 + $0x30] sm:$0xf]
  %v56 = vld [vmem:[%s1 + $0x34] sm:$0xf]
  %v57 = vld [vmem:[%s1 + $0x38] sm:$0xf]
  %v58 = vld [vmem:[%s1 + $0x3c] sm:$0xf]
  %v59 = vld [vmem:[%s1 + $0x40] sm:$0xf]
  %v60 = vld [vmem:[%s1 + $0x44] sm:$0xf]
  %v61 = vld [vmem:[%s1 + $0x48] sm:$0xf]
  %v62 = vld [vmem:[%s1 + $0x4c] sm:$0xf]
  %v63 = vld [vmem:[%s1 + $0x50] sm:$0xf]
  %v64 = vld [vmem:[%s1 + $0x54] sm:$0xf]
  %v65 = vld [vmem:[%s1 + $0x58] sm:$0xf]
  %v66 = vld [vmem:[%s1 + $0x5c] sm:$0xf]
  %v67 = vld [vmem:[%s1 + $0x60] sm:$0xf]
  %v68 = vld [vmem:[%s1 + $0x64] sm:$0xf]
  %v69 = vld [vmem:[%s1 + $0x68] sm:$0xf]
  %v70 = vld [vmem:[%s1 + $0x6c] sm:$0xf]
  %v71 = vld [vmem:[%s1 + $0x70] sm:$0xf]
  %v72 = vld [vmem:[%s1 + $0x74] sm:$0xf]
  %v73 = vld [vmem:[%s1 + $0x78] sm:$0xf]
  %v74 = vld [vmem:[%s1 + $0x7c] sm:$0xf]
  %v75 = vld [vmem:[%s1 + $0x80] sm:$0xf]
  %v76 = vld [vmem:[%s1 + $0x84] sm:$0xf]
  %v77 = vld [vmem:[%s1 + $0x88] sm:$0xf]
  %v78 = vld [vmem:[%s1 + $0x8c] sm:$0xf]
  %v79 = vld [vmem:[%s1 + $0x90] sm:$0xf]
  %v80 = vld [vmem:[%s1 + $0x94] sm:$0xf]
  %v81 = vld [vmem:[%s1 + $0x98] sm:$0xf]
  %v82 = vld [vmem:[%s1 + $0x9c] sm:$0xf]
  %v83 = vld [vmem:[%s1 + $0xa0] sm:$0xf]
  %v84 = vld [vmem:[%s1 + $0xa4] sm:$0xf]
  %v85 = vld [vmem:[%s1 + $0xa8] sm:$0xf]
  %v86 = vld [vmem:[%s1 + $0xac] sm:$0xf]
  %v87 = vld [vmem:[%s1 + $0xb0] sm:$0xf]
  %v88 = vld [vmem:[%s1 + $0xb4] sm:$0xf]
  %v89 = vld [vmem:[%s1 + $0xb8] sm:$0xf]
  %v90 = vld [vmem:[%s1 + $0xbc] sm:$0xf]
  %v91 = vld [vmem:[%s1 + $0xc0] sm:$0xf]
  %v92 = vld [vmem:[%s1 + $0xc4] sm:$0xf]
  %v93 = vld [vmem:[%s1 + $0xc8] sm:$0xf]
  %v94 = vld [vmem:[%s1 + $0xcc] sm:$0xf]
  %v95 = vld [vmem:[%s1 + $0xd0] sm:$0xf]
  %v96 = vld [vmem:[%s1 + $0xd4] sm:$0xf]
  %v97 = vld [vmem:[%s1 + $0xd8] sm:$0xf]
  %v98 = vld [vmem:[%s1 + $0xdc] sm:$0xf]
  %v99 = vld [vmem:[%s1 + $0xe0] sm:$0xf]
  %v100 = vld [vmem:[%s1 + $0xe4] sm:$0xf]
  %v101 = vld [vmem:[%s1 + $0xe8] sm:$0xf]
  %v102 = vld [vmem:[%s1 + $0xec] sm:$0xf]
  %v103 = vld [vmem:[%s1 + $0xf0] sm:$0xf]
  %v104 = vld [vmem:[%s1 + $0xf4] sm:$0xf]
  %v105 = vld [vmem:[%s1 + $0xf8] sm:$0xf]
  %v106 = vld [vmem:[%s1 + $0xfc] sm:$0xf]
  %v107 = vld [vmem:[%s1 + $0x100] sm:$0xf]
  %v108 = vld [vmem:[%s1 + $0x104] sm:$0xf]
  %v109 = vld [vmem:[%s1 + $0x108] sm:$0xf]
  %v110 = vld [vmem:[%s1 + $0x10c] sm:$0xf]
  %v111 = vld [vmem:[%s1 + $0x110] sm:$0xf]
  %v112 = vld [vmem:[%s1 + $0x114] sm:$0xf]
  %v113 = vld [vmem:[%s1 + $0x118] sm:$0xf]
  %v114 = vld [vmem:[%s1 + $0x11c] sm:$0xf]
  %v115 = vld [vmem:[%s1 + $0x120] sm:$0xf]
  %v116 = vld [vmem:[%s1 + $0x124] sm:$0xf]
  %v117 = vld [vmem:[%s1 + $0x128] sm:$0xf]
  %v118 = vld [vmem:[%s1 + $0x12c] sm:$0xf]
  %v119 = vld [vmem:[%s1 + $0x130] sm:$0xf]
  %v120 = vld [vmem:[%s1 + $0x134] sm:$0xf]
  %v121 = vld [vmem:[%s1 + $0x138] sm:$0xf]
  %v122 = vld [vmem:[%s1 + $0x13c] sm:$0xf]
  %v123 = vld [vmem:[%s1 + $0x140] sm:$0xf]
  %v124 = vld [vmem:[%s1 + $0x144] sm:$0xf]
  %v125 = vld [vmem:[%s1 + $0x148] sm:$0xf]
  %v126 = vld [vmem:[%s1 + $0x14c] sm:$0xf]
  %v127 = vld [vmem:[%s1 + $0x150] sm:$0xf]
  %v128 = vld [vmem:[%s1 + $0x154] sm:$0xf]
  %v129 = vld [vmem:[%s1 + $0x158] sm:$0xf]
  %v130 = vld [vmem:[%s1 + $0x15c] sm:$0xf]
  %v131 = vld [vmem:[%s1 + $0x160] sm:$0xf]
  %v132 = vld [vmem:[%s1 + $0x164] sm:$0xf]
  %v133 = vld [vmem:[%s1 + $0x168] sm:$0xf]
  %v134 = vld [vmem:[%s1 + $0x16c] sm:$0xf]
  %v135 = vld [vmem:[%s1 + $0x170] sm:$0xf]
  %v136 = vld [vmem:[%s1 + $0x174] sm:$0xf]
  %v137 = vld [vmem:[%s1 + $0x178] sm:$0xf]
  %v138 = vld [vmem:[%s1 + $0x17c] sm:$0xf]
  %v139 = vld [vmem:[%s1 + $0x180] sm:$0xf]
  %v140 = vld [vmem:[%s1 + $0x184] sm:$0xf]
  %v141 = vld [vmem:[%s2] sm:$0x1]
  %v143 = vlaneseq
  %v144 = vshrl.u32 %v143, 7
  %v145 = vsub.s32 0, %v144
  %v146 = vrot.slane %v141, %v145
  %v164 = vunpack.c.l.b16 %v27
  %v165 = vunpack.c.h.b16 %v27
  %v166 = vunpack.c.l.b16 %v28
  %v167 = vunpack.c.h.b16 %v28
  %v168 = vunpack.c.l.b16 %v29
  %v169 = vunpack.c.h.b16 %v29
  %v170 = vunpack.c.l.b16 %v30
  %v171 = vunpack.c.l.b16 %v31
  %v172 = vunpack.c.h.b16 %v31
  %v173 = vunpack.c.l.b16 %v32
  %v174 = vunpack.c.h.b16 %v32
  %v175 = vunpack.c.l.b16 %v33
  %v176 = vunpack.c.h.b16 %v33
  %v177 = vunpack.c.l.b16 %v34
  %v178 = vunpack.c.l.b16 %v35
  %v179 = vunpack.c.h.b16 %v35
  %v180 = vunpack.c.l.b16 %v36
  %v181 = vunpack.c.h.b16 %v36
  %v182 = vunpack.c.l.b16 %v37
  %v183 = vunpack.c.h.b16 %v37
  %v184 = vunpack.c.l.b16 %v38
  %v185 = vunpack.c.l.b16 %v39
  %v186 = vunpack.c.h.b16 %v39
  %v187 = vunpack.c.l.b16 %v40
  %v188 = vunpack.c.h.b16 %v40
  %v189 = vunpack.c.l.b16 %v41
  %v190 = vunpack.c.h.b16 %v41
  %v191 = vunpack.c.l.b16 %v42
  %v192 = vpack.c.b16 %v171, %v164
  %v193 = vpack.c.b16 %v172, %v165
  %v194 = vpack.c.b16 %v173, %v166
  %v195 = vpack.c.b16 %v174, %v167
  %v196 = vpack.c.b16 %v175, %v168
  %v197 = vpack.c.b16 %v176, %v169
  %v198 = vpack.c.b16 %v177, %v170
  %v199 = vpack.c.b16 %v185, %v178
  %v200 = vpack.c.b16 %v186, %v179
  %v201 = vpack.c.b16 %v187, %v180
  %v202 = vpack.c.b16 %v188, %v181
  %v203 = vpack.c.b16 %v189, %v182
  %v204 = vpack.c.b16 %v190, %v183
  %v205 = vpack.c.b16 %v191, %v184
  %v316 = vunpack.c.l.b16 %v43
  %v317 = vunpack.c.l.b16 %v44
  %v318 = vunpack.c.l.b16 %v45
  %v319 = vunpack.c.l.b16 %v46
  %v320 = vunpack.c.l.b16 %v47
  %v321 = vunpack.c.l.b16 %v48
  %v322 = vunpack.c.l.b16 %v49
  %v323 = vunpack.c.l.b16 %v50
  %v324 = vunpack.c.l.b16 %v51
  %v325 = vunpack.c.l.b16 %v52
  %v326 = vunpack.c.l.b16 %v53
  %v327 = vunpack.c.l.b16 %v54
  %v328 = vunpack.c.l.b16 %v55
  %v329 = vunpack.c.l.b16 %v56
  %v330 = vunpack.c.l.b16 %v57
  %v331 = vunpack.c.l.b16 %v58
  %v332 = vunpack.c.l.b16 %v59
  %v333 = vunpack.c.l.b16 %v60
  %v334 = vunpack.c.l.b16 %v61
  %v335 = vunpack.c.l.b16 %v62
  %v336 = vunpack.c.l.b16 %v63
  %v337 = vunpack.c.l.b16 %v64
  %v338 = vunpack.c.l.b16 %v65
  %v339 = vunpack.c.l.b16 %v66
  %v340 = vunpack.c.l.b16 %v67
  %v341 = vunpack.c.l.b16 %v68
  %v342 = vunpack.c.l.b16 %v69
  %v343 = vunpack.c.l.b16 %v70
  %v344 = vunpack.c.l.b16 %v71
  %v345 = vunpack.c.l.b16 %v72
  %v346 = vunpack.c.l.b16 %v73
  %v347 = vunpack.c.l.b16 %v74
  %v348 = vunpack.c.l.b16 %v75
  %v349 = vunpack.c.l.b16 %v76
  %v350 = vunpack.c.l.b16 %v77
  %v351 = vunpack.c.l.b16 %v78
  %v352 = vunpack.c.l.b16 %v79
  %v353 = vunpack.c.l.b16 %v80
  %v354 = vunpack.c.l.b16 %v81
  %v355 = vunpack.c.l.b16 %v82
  %v356 = vunpack.c.l.b16 %v83
  %v357 = vunpack.c.l.b16 %v84
  %v358 = vunpack.c.l.b16 %v85
  %v359 = vunpack.c.l.b16 %v86
  %v360 = vunpack.c.l.b16 %v87
  %v361 = vunpack.c.l.b16 %v88
  %v362 = vunpack.c.l.b16 %v89
  %v363 = vunpack.c.l.b16 %v90
  %v364 = vunpack.c.l.b16 %v91
  %v365 = vunpack.c.l.b16 %v92
  %v366 = vunpack.c.l.b16 %v93
  %v367 = vunpack.c.l.b16 %v94
  %v368 = vunpack.c.l.b16 %v95
  %v369 = vunpack.c.l.b16 %v96
  %v370 = vunpack.c.l.b16 %v97
  %v371 = vunpack.c.l.b16 %v98
  %v372 = vunpack.c.l.b16 %v99
  %v373 = vunpack.c.l.b16 %v100
  %v374 = vunpack.c.l.b16 %v101
  %v375 = vunpack.c.l.b16 %v102
  %v376 = vunpack.c.l.b16 %v103
  %v377 = vunpack.c.l.b16 %v104
  %v378 = vunpack.c.l.b16 %v105
  %v379 = vunpack.c.l.b16 %v106
  %v380 = vunpack.c.l.b16 %v107
  %v381 = vunpack.c.l.b16 %v108
  %v382 = vunpack.c.l.b16 %v109
  %v383 = vunpack.c.l.b16 %v110
  %v384 = vunpack.c.l.b16 %v111
  %v385 = vunpack.c.l.b16 %v112
  %v386 = vunpack.c.l.b16 %v113
  %v387 = vunpack.c.l.b16 %v114
  %v388 = vunpack.c.l.b16 %v115
  %v389 = vunpack.c.l.b16 %v116
  %v390 = vunpack.c.l.b16 %v117
  %v391 = vunpack.c.l.b16 %v118
  %v392 = vunpack.c.l.b16 %v119
  %v393 = vunpack.c.l.b16 %v120
  %v394 = vunpack.c.l.b16 %v121
  %v395 = vunpack.c.l.b16 %v122
  %v396 = vunpack.c.l.b16 %v123
  %v397 = vunpack.c.l.b16 %v124
  %v398 = vunpack.c.l.b16 %v125
  %v399 = vunpack.c.l.b16 %v126
  %v400 = vunpack.c.l.b16 %v127
  %v401 = vunpack.c.l.b16 %v128
  %v402 = vunpack.c.l.b16 %v129
  %v403 = vunpack.c.l.b16 %v130
  %v404 = vunpack.c.l.b16 %v131
  %v405 = vunpack.c.l.b16 %v132
  %v406 = vunpack.c.l.b16 %v133
  %v407 = vunpack.c.l.b16 %v134
  %v408 = vunpack.c.l.b16 %v135
  %v409 = vunpack.c.l.b16 %v136
  %v410 = vunpack.c.l.b16 %v137
  %v411 = vunpack.c.l.b16 %v138
  %v412 = vunpack.c.l.b16 %v139
  %v413 = vunpack.c.l.b16 %v140
  %v414 = vpack.c.b16 %v317, %v316
  %v415 = vpack.c.b16 %v319, %v318
  %v416 = vpack.c.b16 %v321, %v320
  %v417 = vpack.c.b16 %v323, %v322
  %v418 = vpack.c.b16 %v325, %v324
  %v419 = vpack.c.b16 %v327, %v326
  %v420 = vpack.c.b16 %v329, %v328
  %v421 = vpack.c.b16 %v331, %v330
  %v422 = vpack.c.b16 %v333, %v332
  %v423 = vpack.c.b16 %v335, %v334
  %v424 = vpack.c.b16 %v337, %v336
  %v425 = vpack.c.b16 %v339, %v338
  %v426 = vpack.c.b16 %v341, %v340
  %v427 = vpack.c.b16 %v343, %v342
  %v428 = vpack.c.b16 %v345, %v344
  %v429 = vpack.c.b16 %v347, %v346
  %v430 = vpack.c.b16 %v349, %v348
  %v431 = vpack.c.b16 %v351, %v350
  %v432 = vpack.c.b16 %v353, %v352
  %v433 = vpack.c.b16 %v355, %v354
  %v434 = vpack.c.b16 %v357, %v356
  %v435 = vpack.c.b16 %v359, %v358
  %v436 = vpack.c.b16 %v361, %v360
  %v437 = vpack.c.b16 %v363, %v362
  %v438 = vpack.c.b16 %v365, %v364
  %v439 = vpack.c.b16 %v367, %v366
  %v440 = vpack.c.b16 %v369, %v368
  %v441 = vpack.c.b16 %v371, %v370
  %v442 = vpack.c.b16 %v373, %v372
  %v443 = vpack.c.b16 %v375, %v374
  %v444 = vpack.c.b16 %v377, %v376
  %v445 = vpack.c.b16 %v379, %v378
  %v446 = vpack.c.b16 %v381, %v380
  %v447 = vpack.c.b16 %v383, %v382
  %v448 = vpack.c.b16 %v385, %v384
  %v449 = vpack.c.b16 %v387, %v386
  %v450 = vpack.c.b16 %v389, %v388
  %v451 = vpack.c.b16 %v391, %v390
  %v452 = vpack.c.b16 %v393, %v392
  %v453 = vpack.c.b16 %v395, %v394
  %v454 = vpack.c.b16 %v397, %v396
  %v455 = vpack.c.b16 %v399, %v398
  %v456 = vpack.c.b16 %v401, %v400
  %v457 = vpack.c.b16 %v403, %v402
  %v458 = vpack.c.b16 %v405, %v404
  %v459 = vpack.c.b16 %v407, %v406
  %v460 = vpack.c.b16 %v409, %v408
  %v461 = vpack.c.b16 %v411, %v410
  %v462 = vpack.c.b16 %v413, %v412
  %vm512 = vcmask 130048
  %v514 = vsel %vm512, %v198, 0
  %v517 = vsel %vm512, %v205, 0
  %519 = vmatprep.subr.bf16.mxu0 0
  %520 = vmatpush1.bf16.msra.mxu0 %v414
  %521 = vmatprep.subr.bf16.mxu0 0
  %522 = vmatpush1.bf16.msra.mxu0 %v415
  %523 = vmatprep.subr.bf16.mxu0 0
  %524 = vmatpush1.bf16.msra.mxu0 %v416
  %525 = vmatprep.subr.bf16.mxu0 0
  %526 = vmatpush1.bf16.msra.mxu0 %v417
  %527 = vmatprep.subr.bf16.mxu0 0
  %528 = vmatpush1.bf16.msra.mxu0 %v418
  %529 = vmatprep.subr.bf16.mxu0 0
  %530 = vmatpush1.bf16.msra.mxu0 %v419
  %531 = vmatprep.subr.bf16.mxu0 0
  %532 = vmatpush1.bf16.msra.mxu0 %v420
  %533 = vmatprep.subr.bf16.mxu0 0
  %534 = vmatpush1.bf16.msra.mxu0 %v421
  %535 = vmatprep.subr.bf16.mxu0 0
  %536 = vmatpush1.bf16.msra.mxu0 %v422
  %537 = vmatprep.subr.bf16.mxu0 0
  %538 = vmatpush1.bf16.msra.mxu0 %v423
  %539 = vmatprep.subr.bf16.mxu0 0
  %540 = vmatpush1.bf16.msra.mxu0 %v424
  %541 = vmatprep.subr.bf16.mxu0 0
  %542 = vmatpush1.bf16.msra.mxu0 %v425
  %543 = vmatprep.subr.bf16.mxu0 0
  %544 = vmatpush1.bf16.msra.mxu0 %v426
  %545 = vmatprep.subr.bf16.mxu0 0
  %546 = vmatpush1.bf16.msra.mxu0 %v427
  %547 = vmatprep.subr.bf16.mxu0 0
  %548 = vmatpush1.bf16.msra.mxu0 %v428
  %549 = vmatprep.subr.bf16.mxu0 0
  %550 = vmatpush1.bf16.msra.mxu0 %v429
  %551 = vmatprep.mubr.bf16.mxu0 %v193
  %552 = vmatmul.mubr.bf16.gmra.mrb[0].mxu0 %v192
  %v553 = vpop.f32.mrb[0].mxu0
  %v554 = vadd.f32 %v146, %v553
  %v555 = vpop.f32.mrb[0].mxu0
  %v556 = vpop.f32.mrb[0].mxu0
  %v557 = vadd.f32 %v146, %v556
  %v558 = vpop.f32.mrb[0].mxu0
  %559 = vmatprep.mubr.bf16.mxu0 %v200
  %560 = vmatmul.mubr.bf16.gmra.mrb[0].mxu0 %v199
  %v561 = vpop.f32.mrb[0].mxu0
  %v562 = vadd.f32 %v146, %v561
  %v563 = vpop.f32.mrb[0].mxu0
  %v564 = vpop.f32.mrb[0].mxu0
  %v565 = vadd.f32 %v146, %v564
  %v566 = vpop.f32.mrb[0].mxu0
  %567 = vdwg.mxu0
  %568 = vmatprep.subr.bf16.mxu0 0
  %569 = vmatpush1.bf16.msra.mxu0 %v430
  %570 = vmatprep.subr.bf16.mxu0 0
  %571 = vmatpush1.bf16.msra.mxu0 %v431
  %572 = vmatprep.subr.bf16.mxu0 0
  %573 = vmatpush1.bf16.msra.mxu0 %v432
  %574 = vmatprep.subr.bf16.mxu0 0
  %575 = vmatpush1.bf16.msra.mxu0 %v433
  %576 = vmatprep.subr.bf16.mxu0 0
  %577 = vmatpush1.bf16.msra.mxu0 %v434
  %578 = vmatprep.subr.bf16.mxu0 0
  %579 = vmatpush1.bf16.msra.mxu0 %v435
  %580 = vmatprep.subr.bf16.mxu0 0
  %581 = vmatpush1.bf16.msra.mxu0 %v436
  %582 = vmatprep.subr.bf16.mxu0 0
  %583 = vmatpush1.bf16.msra.mxu0 %v437
  %584 = vmatprep.subr.bf16.mxu0 0
  %585 = vmatpush1.bf16.msra.mxu0 %v438
  %586 = vmatprep.subr.bf16.mxu0 0
  %587 = vmatpush1.bf16.msra.mxu0 %v439
  %588 = vmatprep.subr.bf16.mxu0 0
  %589 = vmatpush1.bf16.msra.mxu0 %v440
  %590 = vmatprep.subr.bf16.mxu0 0
  %591 = vmatpush1.bf16.msra.mxu0 %v441
  %592 = vmatprep.subr.bf16.mxu0 0
  %593 = vmatpush1.bf16.msra.mxu0 %v442
  %594 = vmatprep.subr.bf16.mxu0 0
  %595 = vmatpush1.bf16.msra.mxu0 %v443
  %596 = vmatprep.subr.bf16.mxu0 0
  %597 = vmatpush1.bf16.msra.mxu0 %v444
  %598 = vmatprep.subr.bf16.mxu0 0
  %599 = vmatpush1.bf16.msra.mxu0 %v445
  %600 = vmatprep.mubr.bf16.mxu0 %v195
  %601 = vmatmul.mubr.bf16.gmra.mrb[0].mxu0 %v194
  %v602 = vpop.f32.mrb[0].mxu0
  %v603 = vadd.f32 %v554, %v602
  %v604 = vpop.f32.mrb[0].mxu0
  %v605 = vpop.f32.mrb[0].mxu0
  %v606 = vadd.f32 %v557, %v605
  %v607 = vpop.f32.mrb[0].mxu0
  %608 = vmatprep.mubr.bf16.mxu0 %v202
  %609 = vmatmul.mubr.bf16.gmra.mrb[0].mxu0 %v201
  %v610 = vpop.f32.mrb[0].mxu0
  %v611 = vadd.f32 %v562, %v610
  %v612 = vpop.f32.mrb[0].mxu0
  %v613 = vpop.f32.mrb[0].mxu0
  %v614 = vadd.f32 %v565, %v613
  %v615 = vpop.f32.mrb[0].mxu0
  %616 = vdwg.mxu0
  %617 = vmatprep.subr.bf16.mxu0 0
  %618 = vmatpush1.bf16.msra.mxu0 %v446
  %619 = vmatprep.subr.bf16.mxu0 0
  %620 = vmatpush1.bf16.msra.mxu0 %v447
  %621 = vmatprep.subr.bf16.mxu0 0
  %622 = vmatpush1.bf16.msra.mxu0 %v448
  %623 = vmatprep.subr.bf16.mxu0 0
  %624 = vmatpush1.bf16.msra.mxu0 %v449
  %625 = vmatprep.subr.bf16.mxu0 0
  %626 = vmatpush1.bf16.msra.mxu0 %v450
  %627 = vmatprep.subr.bf16.mxu0 0
  %628 = vmatpush1.bf16.msra.mxu0 %v451
  %629 = vmatprep.subr.bf16.mxu0 0
  %630 = vmatpush1.bf16.msra.mxu0 %v452
  %631 = vmatprep.subr.bf16.mxu0 0
  %632 = vmatpush1.bf16.msra.mxu0 %v453
  %633 = vmatprep.subr.bf16.mxu0 0
  %634 = vmatpush1.bf16.msra.mxu0 %v454
  %635 = vmatprep.subr.bf16.mxu0 0
  %636 = vmatpush1.bf16.msra.mxu0 %v455
  %637 = vmatprep.subr.bf16.mxu0 0
  %638 = vmatpush1.bf16.msra.mxu0 %v456
  %639 = vmatprep.subr.bf16.mxu0 0
  %640 = vmatpush1.bf16.msra.mxu0 %v457
  %641 = vmatprep.subr.bf16.mxu0 0
  %642 = vmatpush1.bf16.msra.mxu0 %v458
  %643 = vmatprep.subr.bf16.mxu0 0
  %644 = vmatpush1.bf16.msra.mxu0 %v459
  %645 = vmatprep.subr.bf16.mxu0 0
  %646 = vmatpush1.bf16.msra.mxu0 %v460
  %647 = vmatprep.subr.bf16.mxu0 0
  %648 = vmatpush1.bf16.msra.mxu0 %v461
  %649 = vmatprep.mubr.bf16.mxu0 %v197
  %650 = vmatmul.mubr.bf16.gmra.mrb[0].mxu0 %v196
  %v651 = vpop.f32.mrb[0].mxu0
  %v652 = vadd.f32 %v603, %v651
  %v653 = vpop.f32.mrb[0].mxu0
  %v654 = vpop.f32.mrb[0].mxu0
  %v655 = vadd.f32 %v606, %v654
  %v656 = vpop.f32.mrb[0].mxu0
  %657 = vmatprep.mubr.bf16.mxu0 %v204
  %658 = vmatmul.mubr.bf16.gmra.mrb[0].mxu0 %v203
  %v659 = vpop.f32.mrb[0].mxu0
  %v660 = vadd.f32 %v611, %v659
  %v661 = vpop.f32.mrb[0].mxu0
  %v662 = vpop.f32.mrb[0].mxu0
  %v663 = vadd.f32 %v614, %v662
  %v664 = vpop.f32.mrb[0].mxu0
  %665 = vdwg.mxu0
  %666 = vmatprep.subr.bf16.mxu0 0
  %667 = vmatpush1.bf16.msra.mxu0 %v462
  %668 = vmatprep.subr.bf16.mxu0 0
  %669 = vmatpush1.bf16.msra.mxu0 0
  %670 = vmatprep.subr.bf16.mxu0 0
  %671 = vmatpush1.bf16.msra.mxu0 0
  %672 = vmatprep.subr.bf16.mxu0 0
  %673 = vmatpush1.bf16.msra.mxu0 0
  %674 = vmatprep.subr.bf16.mxu0 0
  %675 = vmatpush1.bf16.msra.mxu0 0
  %676 = vmatprep.subr.bf16.mxu0 0
  %677 = vmatpush1.bf16.msra.mxu0 0
  %678 = vmatprep.subr.bf16.mxu0 0
  %679 = vmatpush1.bf16.msra.mxu0 0
  %680 = vmatprep.subr.bf16.mxu0 0
  %681 = vmatpush1.bf16.msra.mxu0 0
  %682 = vmatprep.subr.bf16.mxu0 0
  %683 = vmatpush1.bf16.msra.mxu0 0
  %684 = vmatprep.subr.bf16.mxu0 0
  %685 = vmatpush1.bf16.msra.mxu0 0
  %686 = vmatprep.subr.bf16.mxu0 0
  %687 = vmatpush1.bf16.msra.mxu0 0
  %688 = vmatprep.subr.bf16.mxu0 0
  %689 = vmatpush1.bf16.msra.mxu0 0
  %690 = vmatprep.subr.bf16.mxu0 0
  %691 = vmatpush1.bf16.msra.mxu0 0
  %692 = vmatprep.subr.bf16.mxu0 0
  %693 = vmatpush1.bf16.msra.mxu0 0
  %694 = vmatprep.subr.bf16.mxu0 0
  %695 = vmatpush1.bf16.msra.mxu0 0
  %696 = vmatprep.subr.bf16.mxu0 0
  %697 = vmatpush1.bf16.msra.mxu0 0
  %698 = vmatprep.mubr.bf16.mxu0 0
  %699 = vmatmul.mubr.bf16.gmra.mrb[0].mxu0 %v514
  %v700 = vpop.f32.mrb[0].mxu0
  %v701 = vadd.f32 %v652, %v700
  %v702 = vpop.f32.mrb[0].mxu0
  %v703 = vpop.f32.mrb[0].mxu0
  %v704 = vadd.f32 %v655, %v703
  %v705 = vpop.f32.mrb[0].mxu0
  %706 = vmatprep.mubr.bf16.mxu0 0
  %707 = vmatmul.mubr.bf16.gmra.mrb[0].mxu0 %v517
  %v708 = vpop.f32.mrb[0].mxu0
  %v709 = vadd.f32 %v660, %v708
  %v710 = vpop.f32.mrb[0].mxu0
  %v711 = vpop.f32.mrb[0].mxu0
  %v712 = vadd.f32 %v663, %v711
  %v713 = vpop.f32.mrb[0].mxu0
  %714 = vdwg.mxu0
  %v715 = vmax.f32 %v701, 0.0
  %v716 = vmax.f32 %v704, 0.0
  %v717 = vmax.f32 %v709, 0.0
  %v718 = vmax.f32 %v712, 0.0
  %v719 = vpack.c.bf16 %v716, %v715
  %v720 = vpack.c.bf16 %v718, %v717
  %v721 = vld [vmem:[%s3] sm:$0xf]
  %v722 = vld [vmem:[%s3 + $0x4] sm:$0xf]
  %v723 = vld [vmem:[%s3 + $0x8] sm:$0xf]
  %v724 = vld [vmem:[%s3 + $0xc] sm:$0xf]
  %v725 = vld [vmem:[%s3 + $0x10] sm:$0xf]
  %v726 = vld [vmem:[%s3 + $0x14] sm:$0xf]
  %v727 = vld [vmem:[%s3 + $0x18] sm:$0xf]
  %v728 = vld [vmem:[%s3 + $0x1c] sm:$0xf]
  %v729 = vld [vmem:[%s3 + $0x20] sm:$0xf]
  %v730 = vld [vmem:[%s3 + $0x24] sm:$0xf]
  %v731 = vld [vmem:[%s3 + $0x28] sm:$0xf]
  %v732 = vld [vmem:[%s3 + $0x2c] sm:$0xf]
  %v733 = vld [vmem:[%s3 + $0x30] sm:$0xf]
  %v734 = vld [vmem:[%s3 + $0x34] sm:$0xf]
  %v735 = vld [vmem:[%s3 + $0x38] sm:$0xf]
  %v736 = vld [vmem:[%s3 + $0x3c] sm:$0xf]
  %v737 = vld [vmem:[%s4] sm:$0x1]
  %v739 = vlaneseq
  %v740 = vshrl.u32 %v739, 7
  %v741 = vsub.s32 0, %v740
  %v742 = vrot.slane %v737, %v741
  %v760 = vunpack.c.l.b16 %v721
  %v761 = vunpack.c.l.b16 %v722
  %v762 = vunpack.c.l.b16 %v723
  %v763 = vunpack.c.l.b16 %v724
  %v764 = vunpack.c.l.b16 %v725
  %v765 = vunpack.c.l.b16 %v726
  %v766 = vunpack.c.l.b16 %v727
  %v767 = vunpack.c.l.b16 %v728
  %v768 = vunpack.c.l.b16 %v729
  %v769 = vunpack.c.l.b16 %v730
  %v770 = vunpack.c.l.b16 %v731
  %v771 = vunpack.c.l.b16 %v732
  %v772 = vunpack.c.l.b16 %v733
  %v773 = vunpack.c.l.b16 %v734
  %v774 = vunpack.c.l.b16 %v735
  %v775 = vunpack.c.l.b16 %v736
  %v776 = vpack.c.b16 %v761, %v760
  %v777 = vpack.c.b16 %v763, %v762
  %v778 = vpack.c.b16 %v765, %v764
  %v779 = vpack.c.b16 %v767, %v766
  %v780 = vpack.c.b16 %v769, %v768
  %v781 = vpack.c.b16 %v771, %v770
  %v782 = vpack.c.b16 %v773, %v772
  %v783 = vpack.c.b16 %v775, %v774
  %792 = vmatprep.subr.bf16.mxu0 0
  %793 = vmatpush1.bf16.msra.mxu0 %v776
  %794 = vmatprep.subr.bf16.mxu0 0
  %795 = vmatpush1.bf16.msra.mxu0 %v777
  %796 = vmatprep.subr.bf16.mxu0 0
  %797 = vmatpush1.bf16.msra.mxu0 %v778
  %798 = vmatprep.subr.bf16.mxu0 0
  %799 = vmatpush1.bf16.msra.mxu0 %v779
  %800 = vmatprep.subr.bf16.mxu0 0
  %801 = vmatpush1.bf16.msra.mxu0 %v780
  %802 = vmatprep.subr.bf16.mxu0 0
  %803 = vmatpush1.bf16.msra.mxu0 %v781
  %804 = vmatprep.subr.bf16.mxu0 0
  %805 = vmatpush1.bf16.msra.mxu0 %v782
  %806 = vmatprep.subr.bf16.mxu0 0
  %807 = vmatpush1.bf16.msra.mxu0 %v783
  %808 = vmatprep.subr.bf16.mxu0 0
  %809 = vmatpush1.bf16.msra.mxu0 0
  %810 = vmatprep.subr.bf16.mxu0 0
  %811 = vmatpush1.bf16.msra.mxu0 0
  %812 = vmatprep.subr.bf16.mxu0 0
  %813 = vmatpush1.bf16.msra.mxu0 0
  %814 = vmatprep.subr.bf16.mxu0 0
  %815 = vmatpush1.bf16.msra.mxu0 0
  %816 = vmatprep.subr.bf16.mxu0 0
  %817 = vmatpush1.bf16.msra.mxu0 0
  %818 = vmatprep.subr.bf16.mxu0 0
  %819 = vmatpush1.bf16.msra.mxu0 0
  %820 = vmatprep.subr.bf16.mxu0 0
  %821 = vmatpush1.bf16.msra.mxu0 0
  %822 = vmatprep.subr.bf16.mxu0 0
  %823 = vmatpush1.bf16.msra.mxu0 0
  %824 = vmatprep.mubr.bf16.mxu0 0
  %825 = vmatmul.mubr.bf16.gmra.mrb[0].mxu0 %v719
  %v826 = vpop.f32.mrb[0].mxu0
  %v827 = vadd.f32 %v742, %v826
  %v828 = vpop.f32.mrb[0].mxu0
  %v829 = vpop.f32.mrb[0].mxu0
  %v830 = vadd.f32 %v742, %v829
  %v831 = vpop.f32.mrb[0].mxu0
  %832 = vmatprep.mubr.bf16.mxu0 0
  %833 = vmatmul.mubr.bf16.gmra.mrb[0].mxu0 %v720
  %v834 = vpop.f32.mrb[0].mxu0
  %v835 = vadd.f32 %v742, %v834
  %v836 = vpop.f32.mrb[0].mxu0
  %v837 = vpop.f32.mrb[0].mxu0
  %v838 = vadd.f32 %v742, %v837
  %v839 = vpop.f32.mrb[0].mxu0
  %840 = vdwg.mxu0
  %v841 = vmax.f32 %v827, 0.0
  %v842 = vmax.f32 %v830, 0.0
  %v843 = vmax.f32 %v835, 0.0
  %v844 = vmax.f32 %v838, 0.0
  %v845 = vpack.c.bf16 %v842, %v841
  %v846 = vpack.c.bf16 %v844, %v843
  %v847 = vld [vmem:[%s5] sm:$0xf]
  %v848 = vld [vmem:[%s5 + $0x4] sm:$0xf]
  %v849 = vld [vmem:[%s5 + $0x8] sm:$0xf]
  %v850 = vld [vmem:[%s5 + $0xc] sm:$0xf]
  %v851 = vld [vmem:[%s5 + $0x10] sm:$0xf]
  %v852 = vld [vmem:[%s5 + $0x14] sm:$0xf]
  %v853 = vld [vmem:[%s5 + $0x18] sm:$0xf]
  %v854 = vld [vmem:[%s5 + $0x1c] sm:$0xf]
  %v855 = vld [vmem:[%s5 + $0x20] sm:$0xf]
  %v856 = vld [vmem:[%s5 + $0x24] sm:$0xf]
  %v857 = vld [vmem:[%s5 + $0x28] sm:$0xf]
  %v858 = vld [vmem:[%s5 + $0x2c] sm:$0xf]
  %v859 = vld [vmem:[%s5 + $0x30] sm:$0xf]
  %v860 = vld [vmem:[%s5 + $0x34] sm:$0xf]
  %v861 = vld [vmem:[%s5 + $0x38] sm:$0xf]
  %v862 = vld [vmem:[%s5 + $0x3c] sm:$0xf]
  %v863 = vld [vmem:[%s6] sm:$0x1]
  %v865 = vlaneseq
  %v866 = vshrl.u32 %v865, 7
  %v867 = vsub.s32 0, %v866
  %v868 = vrot.slane %v863, %v867
  %v886 = vunpack.c.l.b16 %v847
  %v887 = vunpack.c.l.b16 %v848
  %v888 = vunpack.c.l.b16 %v849
  %v889 = vunpack.c.l.b16 %v850
  %v890 = vunpack.c.l.b16 %v851
  %v891 = vunpack.c.l.b16 %v852
  %v892 = vunpack.c.l.b16 %v853
  %v893 = vunpack.c.l.b16 %v854
  %v894 = vunpack.c.l.b16 %v855
  %v895 = vunpack.c.l.b16 %v856
  %v896 = vunpack.c.l.b16 %v857
  %v897 = vunpack.c.l.b16 %v858
  %v898 = vunpack.c.l.b16 %v859
  %v899 = vunpack.c.l.b16 %v860
  %v900 = vunpack.c.l.b16 %v861
  %v901 = vunpack.c.l.b16 %v862
  %v902 = vpack.c.b16 %v887, %v886
  %v903 = vpack.c.b16 %v889, %v888
  %v904 = vpack.c.b16 %v891, %v890
  %v905 = vpack.c.b16 %v893, %v892
  %v906 = vpack.c.b16 %v895, %v894
  %v907 = vpack.c.b16 %v897, %v896
  %v908 = vpack.c.b16 %v899, %v898
  %v909 = vpack.c.b16 %v901, %v900
  %918 = vmatprep.subr.bf16.mxu0 0
  %919 = vmatpush1.bf16.msra.mxu0 %v902
  %920 = vmatprep.subr.bf16.mxu0 0
  %921 = vmatpush1.bf16.msra.mxu0 %v903
  %922 = vmatprep.subr.bf16.mxu0 0
  %923 = vmatpush1.bf16.msra.mxu0 %v904
  %924 = vmatprep.subr.bf16.mxu0 0
  %925 = vmatpush1.bf16.msra.mxu0 %v905
  %926 = vmatprep.subr.bf16.mxu0 0
  %927 = vmatpush1.bf16.msra.mxu0 %v906
  %928 = vmatprep.subr.bf16.mxu0 0
  %929 = vmatpush1.bf16.msra.mxu0 %v907
  %930 = vmatprep.subr.bf16.mxu0 0
  %931 = vmatpush1.bf16.msra.mxu0 %v908
  %932 = vmatprep.subr.bf16.mxu0 0
  %933 = vmatpush1.bf16.msra.mxu0 %v909
  %934 = vmatprep.subr.bf16.mxu0 0
  %935 = vmatpush1.bf16.msra.mxu0 0
  %936 = vmatprep.subr.bf16.mxu0 0
  %937 = vmatpush1.bf16.msra.mxu0 0
  %938 = vmatprep.subr.bf16.mxu0 0
  %939 = vmatpush1.bf16.msra.mxu0 0
  %940 = vmatprep.subr.bf16.mxu0 0
  %941 = vmatpush1.bf16.msra.mxu0 0
  %942 = vmatprep.subr.bf16.mxu0 0
  %943 = vmatpush1.bf16.msra.mxu0 0
  %944 = vmatprep.subr.bf16.mxu0 0
  %945 = vmatpush1.bf16.msra.mxu0 0
  %946 = vmatprep.subr.bf16.mxu0 0
  %947 = vmatpush1.bf16.msra.mxu0 0
  %948 = vmatprep.subr.bf16.mxu0 0
  %949 = vmatpush1.bf16.msra.mxu0 0
  %950 = vmatprep.mubr.bf16.mxu0 0
  %951 = vmatmul.mubr.bf16.gmra.mrb[0].mxu0 %v845
  %v952 = vpop.f32.mrb[0].mxu0
  %v953 = vadd.f32 %v868, %v952
  %v954 = vpop.f32.mrb[0].mxu0
  %v955 = vpop.f32.mrb[0].mxu0
  %v956 = vadd.f32 %v868, %v955
  %v957 = vpop.f32.mrb[0].mxu0
  %958 = vmatprep.mubr.bf16.mxu0 0
  %959 = vmatmul.mubr.bf16.gmra.mrb[0].mxu0 %v846
  %v960 = vpop.f32.mrb[0].mxu0
  %v961 = vadd.f32 %v868, %v960
  %v962 = vpop.f32.mrb[0].mxu0
  %v963 = vpop.f32.mrb[0].mxu0
  %v964 = vadd.f32 %v868, %v963
  %v965 = vpop.f32.mrb[0].mxu0
  %966 = vdwg.mxu0
  %967 = vst [vmem:[%s7] sm:$0xff] %v953
  %968 = vst [vmem:[%s7 + $0x8] sm:$0xff] %v956
  %969 = vst [vmem:[%s7 + $0x10] sm:$0xff] %v961
  %970 = vst [vmem:[%s7 + $0x18] sm:$0xff] %v964
  // Predicated region
  $region30: #{feedforward_nn.1} parent=0 // pred_check
    _
  $region31: #{feedforward_nn.1} parent=0 // pred_check_branch
    %972 = sbr.rel (0) target = $region33
  $region32: #{feedforward_nn.1} parent=0 // pred_region
    _
  $region33: #{feedforward_nn.1} parent=0 // pred_fallthru
    _
  // Predicated region
  $region34: #{feedforward_nn.1} parent=0 // pred_check
    _
  $region35: #{feedforward_nn.1} parent=0 // pred_check_branch
    %974 = sbr.rel (0) target = $region37
  $region36: #{feedforward_nn.1} parent=0 // pred_region
    _
  $region37: #{feedforward_nn.1} parent=0 // pred_fallthru
    _

</llo_original>
